<compile_context>
chip_gen: v7x
topology: tpu7x:2x2x1
jax: 0.10.0
libtpu: 0.0.40
codegen_flags: <defaults>
</compile_context>

<pallas_src>
import jax
import jax.numpy as jnp
from jax.experimental import pallas as pl
from jax.experimental.pallas import tpu as pltpu


def _linear_kernel(x_ref, w_ref, b_ref, o_ref):
    # x_ref: (TB, K) input tile, w_ref: (K, P) resident weight,
    # b_ref: (1,) f32 bias in SMEM, o_ref: (TB, P) output tile.
    acc = jnp.dot(x_ref[...], w_ref[...], preferred_element_type=jnp.float32)
    o_ref[...] = (acc + b_ref[0]).astype(o_ref.dtype)


def _vmem_budget():
    """Per-input-buffer byte budget and scoped-VMEM limit, derived from the
    actual chip (v5e/v6e: 128 MiB physical, v7x: 64 MiB per TensorCore)."""
    cap = 64 << 20  # conservative fallback = v7x per-core VMEM
    try:
        info = pltpu.get_tpu_info()
        cap = int(getattr(info, "vmem_capacity_bytes", cap)) or cap
    except Exception:
        pass
    per_buffer = min(cap // 4, 24 << 20)        # x is double-buffered by Pallas
    scoped_limit = min((cap * 3) // 4, 96 << 20)  # leave headroom for weight/out
    return per_buffer, scoped_limit


def _pick_rows_per_tile(rows, row_bytes, per_buffer_bytes):
    """Largest sublane-aligned batch tile that (a) fits the per-buffer VMEM
    budget, (b) is >= ~1 MiB so per-grid-step overhead is amortized, and
    (c) leaves >= ~8 grid steps when the batch allows it."""
    if rows <= 8:
        return rows
    max_rows = max(8, per_buffer_bytes // max(1, row_bytes))
    min_rows = max(8, (1 << 20) // max(1, row_bytes))
    target_rows = pl.cdiv(rows, 8)
    tb = max(min(max_rows, target_rows), min(min_rows, max_rows))
    tb = min(tb, rows)
    return max(8, (tb // 8) * 8)


def regression_forward(x, weight, bias):
    """x: [B, D] (any float dtype), weight: [1, D] (PyTorch nn.Linear layout),
    bias: [1].  Returns [B, 1] == x @ weight.T + bias (f32-accumulated)."""
    B, D = x.shape
    out_dtype = jnp.result_type(x.dtype, weight.dtype)
    per_buffer, vmem_limit = _vmem_budget()

    w_flat = weight.reshape(D)
    b_smem = bias.reshape(1).astype(jnp.float32)

    # Lane-packing factor for small D; skip if it would require padding B.
    pack = 128 // D if (D <= 128 and 128 % D == 0) else 1
    if pack > 1 and B % pack != 0:
        pack = 1  # avoid an extra HBM pass just to pad the batch

    if pack > 1:
        # [B, D] -> [B/pack, 128] is a free contiguous reshape; the weight
        # becomes a tiny block-diagonal [128, pack] so one MXU pass produces
        # `pack` row-sums per packed row.
        x2 = x.reshape(B // pack, pack * D)
        eye = jnp.eye(pack, dtype=jnp.float32)
        w2 = (eye[:, None, :] * w_flat.astype(jnp.float32)[None, :, None])
        w2 = w2.reshape(pack * D, pack).astype(x.dtype)
        out_rows, out_cols = B // pack, pack
    else:
        x2 = x
        w2 = w_flat.reshape(D, 1).astype(x.dtype)
        out_rows, out_cols = B, 1

    rows, k = x2.shape
    row_bytes = k * jnp.dtype(x2.dtype).itemsize
    tb = _pick_rows_per_tile(rows, row_bytes, per_buffer)
    grid = (pl.cdiv(rows, tb),)

    out = pl.pallas_call(
        _linear_kernel,
        out_shape=jax.ShapeDtypeStruct((out_rows, out_cols), out_dtype),
        grid_spec=pltpu.PrefetchScalarGridSpec(
            num_scalar_prefetch=0,
            grid=grid,
            in_specs=[
                pl.BlockSpec((tb, k), lambda i: (i, 0)),         # streaming x tile
                pl.BlockSpec((k, out_cols), lambda i: (0, 0)),   # resident weight
                pl.BlockSpec(memory_space=pltpu.SMEM),           # bias scalar
            ],
            out_specs=pl.BlockSpec((tb, out_cols), lambda i: (i, 0)),
        ),
        compiler_params=pltpu.CompilerParams(
            dimension_semantics=("parallel",),
            vmem_limit_bytes=int(vmem_limit),
        ),
    )(x2, w2, b_smem)

    # Row-major (B/pack, pack) flattens to batch order, so this reshape is free.
    return out.reshape(B, 1)


if __name__ == "__main__":
    embedding_dim = 32
    batch = 8

    key = jax.random.PRNGKey(0)
    kx, kw, kb = jax.random.split(key, 3)

    x = jax.random.normal(kx, (batch, embedding_dim), dtype=jnp.float32)
    # Deterministic parameter init (mimicking nn.Linear's uniform range scale).
    bound = 1.0 / (embedding_dim ** 0.5)
    weight = jax.random.uniform(kw, (1, embedding_dim), jnp.float32, -bound, bound)
    bias = jax.random.uniform(kb, (1,), jnp.float32, -bound, bound)

    out = regression_forward(x, weight, bias)
    jax.block_until_ready(out)
    ref = x @ weight.T + bias
    assert out.shape == (batch, 1)
    assert jnp.allclose(out, ref, atol=1e-5, rtol=1e-5), "mismatch (packed path)"

    # Lane-packed path with a batch that is NOT a multiple of the tile size
    # (exercises Pallas' padded partial-final-tile semantics).
    x3 = jax.random.normal(kb, (1000, embedding_dim), dtype=jnp.float32)
    out3 = regression_forward(x3, weight, bias)
    jax.block_until_ready(out3)
    ref3 = x3 @ weight.T + bias
    assert out3.shape == (1000, 1)
    assert jnp.allclose(out3, ref3, atol=1e-4, rtol=1e-4), "mismatch (packed partial tile)"

    # General (unpacked) path: D not a divisor of 128, B not a multiple of tb.
    x2 = jax.random.normal(kx, (37, 200), dtype=jnp.float32)
    w2 = jax.random.uniform(kw, (1, 200), jnp.float32, -0.1, 0.1)
    out2 = regression_forward(x2, w2, bias)
    jax.block_until_ready(out2)
    ref2 = x2 @ w2.T + bias
    assert out2.shape == (37, 1)
    assert jnp.allclose(out2, ref2, atol=1e-4, rtol=1e-4), "mismatch (general path)"

    print("KERNEL_OK")
</pallas_src>

<mosaic_0001>
module attributes {stable_mosaic.version = 11 : i64} {
  func.func @_linear_kernel(%arg0: i32, %arg1: memref<2x128xf32, #tpu.memory_space<vmem>>, %arg2: memref<128x4xf32, #tpu.memory_space<vmem>>, %arg3: memref<1xf32, #tpu.memory_space<smem>>, %arg4: memref<2x4xf32, #tpu.memory_space<vmem>>) attributes {dimension_semantics = [#tpu.dimension_semantics<parallel>], iteration_bounds = array<i64: 1>, scalar_prefetch = 0 : i64, scratch_operands = 0 : i64, tpu.core_type = #tpu.core_type<tc>, window_params = [{transform_indices = @transform_0, window_bounds = array<i64: 2, 128>}, {pipeline_mode = #tpu.pipeline_mode<synchronous>, transform_indices = @transform_1, window_bounds = array<i64: 128, 4>}, {transform_indices = @transform_2, window_bounds = array<i64: 1>}, {transform_indices = @transform_3, window_bounds = array<i64: 2, 4>}]} {
    %c0 = arith.constant 0 : index
    %c0_0 = arith.constant 0 : index
    %0 = vector.load %arg1[%c0, %c0_0] : memref<2x128xf32, #tpu.memory_space<vmem>>, vector<2x128xf32>
    %c0_1 = arith.constant 0 : index
    %c0_2 = arith.constant 0 : index
    %1 = vector.load %arg2[%c0_1, %c0_2] : memref<128x4xf32, #tpu.memory_space<vmem>>, vector<128x4xf32>
    %cst = arith.constant dense<0.000000e+00> : vector<2x4xf32>
    %2 = tpu.matmul %0, %1, %cst {dimension_numbers = #tpu.dot_dimension_numbers<[1], [0], [0], [1], [0, 0, 1, 1], [], []>} : vector<2x128xf32>, vector<128x4xf32>, vector<2x4xf32> -> vector<2x4xf32>
    %c0_3 = arith.constant 0 : index
    %3 = memref.load %arg3[%c0_3] : memref<1xf32, #tpu.memory_space<smem>>
    %4 = vector.broadcast %3 : f32 to vector<2x4xf32>
    %5 = arith.addf %2, %4 : vector<2x4xf32>
    %c0_4 = arith.constant 0 : index
    %c0_5 = arith.constant 0 : index
    %6 = vector.load %arg4[%c0_4, %c0_5] : memref<2x4xf32, #tpu.memory_space<vmem>>, vector<2x4xf32>
    tpu.vector_store %arg4[%c0_4, %c0_5], %5 {strides = array<i32>} : memref<2x4xf32, #tpu.memory_space<vmem>>, vector<2x4xf32>,
    return
  }
  func.func @transform_0(%arg0: i32) -> (i32, i32) {
    %c0_i32 = arith.constant 0 : i32
    %c0_i32_0 = arith.constant 0 : i32
    return %arg0, %c0_i32 : i32, i32
  }
  func.func @transform_1(%arg0: i32) -> (i32, i32) {
    %c0_i32 = arith.constant 0 : i32
    %c0_i32_0 = arith.constant 0 : i32
    %c0_i32_1 = arith.constant 0 : i32
    return %c0_i32, %c0_i32_0 : i32, i32
  }
  func.func @transform_2(%arg0: i32) -> i32 {
    %c0_i32 = arith.constant 0 : i32
    %c0_i32_0 = arith.constant 0 : i32
    return %c0_i32 : i32
  }
  func.func @transform_3(%arg0: i32) -> (i32, i32) {
    %c0_i32 = arith.constant 0 : i32
    %c0_i32_0 = arith.constant 0 : i32
    return %arg0, %c0_i32 : i32, i32
  }
}

</mosaic_0001>

<llo_original>
// kernel: tpu_custom_call.1
$region0: #{tpu_custom_call.1}
  #allocation0 [shape = 'u32[]', space=smem, size = 0x4, offset = 0x4, fixed_abs, tag = 'smem constant byte address 0x4 - core index']
  #allocation1 [shape = 'u32[144,128]{1,0:T(1,128)}', space=vmem, size = 0x12000, scoped, tag = 'internal scratch']
  #allocation2 [shape = 'f32[1]{0:T(128)S(6)}', space=smem, size = 0x200, scoped, tag = 'scoped memory for tpu_custom_call.1']
  %s0 = inlined_call_operand.vmem [shape: f32[2,128], index: 0, kind: input, shape index: {}]
  %s1 = inlined_call_operand.vmem [shape: f32[128,4], index: 1, kind: input, shape index: {}]
  %s2 = inlined_call_operand.<no memory space> [shape: f32[1], index: 2, kind: input, shape index: {}]
  %s3 = inlined_call_operand.hbm [shape: f32[2,4], index: 3, kind: output, shape index: {}]
  %s4 = sld [smem:[#allocation0]]
  $region22: #{tpu_custom_call.1} parent=0
    _
  %s6 = ssub.s32 1, %s4
  %s7 = scalar_select 0, %s6, %s4
  %8 = sst [smem:[#allocation2]] %s2
  $region1: #{tpu_custom_call.1} parent=0
    #allocation3 [shape = 'u8[1024]{0}', space=vmem, size = 0x400, scoped, tag = 'output window, operand 0, single buffered']
    #allocation4 [shape = 's32[1]{0}', space=sflag, size = 0x4, scoped, tag = 'scoped memory for tpu_custom_call.1']
    %9 = vsyncpa [#allocation4], 0
    // Predicated region
    $region2: #{tpu_custom_call.1} parent=1 // pred_check
      _
    $region3: #{tpu_custom_call.1} parent=1 // pred_check_branch
      %11 = sbr.rel (0) target = $region5
    $region4: #{tpu_custom_call.1} parent=1 // pred_region
      _
    $region5: #{tpu_custom_call.1} parent=1 // pred_fallthru
      _
    // Predicated region
    $region6: #{tpu_custom_call.1} parent=1 // pred_check
      _
    $region7: #{tpu_custom_call.1} parent=1 // pred_check_branch
      %13 = sbr.rel (0) target = $region9
    $region8: #{tpu_custom_call.1} parent=1 // pred_region
      _
    $region9: #{tpu_custom_call.1} parent=1 // pred_fallthru
      _
    // Predicated region
    $region10: #{tpu_custom_call.1} parent=1 // pred_check
      _
    $region11: #{tpu_custom_call.1} parent=1 // pred_check_branch
      %15 = sbr.rel (0) target = $region13
    $region12: #{tpu_custom_call.1} parent=1 // pred_region
      _
    $region13: #{tpu_custom_call.1} parent=1 // pred_fallthru
      _
    %v16 = vld [vmem:[%s0] sm:$0x3]
    %v17 = vld [vmem:[%s1] sm:$0xff]
    %v18 = vld [vmem:[%s1 + $0x8] sm:$0xff]
    %v19 = vld [vmem:[%s1 + $0x10] sm:$0xff]
    %v20 = vld [vmem:[%s1 + $0x18] sm:$0xff]
    %v21 = vld [vmem:[%s1 + $0x20] sm:$0xff]
    %v22 = vld [vmem:[%s1 + $0x28] sm:$0xff]
    %v23 = vld [vmem:[%s1 + $0x30] sm:$0xff]
    %v24 = vld [vmem:[%s1 + $0x38] sm:$0xff]
    %v25 = vld [vmem:[%s1 + $0x40] sm:$0xff]
    %v26 = vld [vmem:[%s1 + $0x48] sm:$0xff]
    %v27 = vld [vmem:[%s1 + $0x50] sm:$0xff]
    %v28 = vld [vmem:[%s1 + $0x58] sm:$0xff]
    %v29 = vld [vmem:[%s1 + $0x60] sm:$0xff]
    %v30 = vld [vmem:[%s1 + $0x68] sm:$0xff]
    %v31 = vld [vmem:[%s1 + $0x70] sm:$0xff]
    %v32 = vld [vmem:[%s1 + $0x78] sm:$0xff]
    %s33 = sld [smem:[#allocation2]]
    %v34 = vstv %s33
    %35 = vmatprep.subr.mxu0 0.0
    %36 = vmatpush1.msra.mxu0 %v17
    %37 = vmatprep.subr.mxu0 0.0
    %38 = vmatpush1.msra.mxu0 %v18
    %39 = vmatprep.subr.mxu0 0.0
    %40 = vmatpush1.msra.mxu0 %v19
    %41 = vmatprep.subr.mxu0 0.0
    %42 = vmatpush1.msra.mxu0 %v20
    %43 = vmatprep.subr.mxu0 0.0
    %44 = vmatpush1.msra.mxu0 %v21
    %45 = vmatprep.subr.mxu0 0.0
    %46 = vmatpush1.msra.mxu0 %v22
    %47 = vmatprep.subr.mxu0 0.0
    %48 = vmatpush1.msra.mxu0 %v23
    %49 = vmatprep.subr.mxu0 0.0
    %50 = vmatpush1.msra.mxu0 %v24
    %51 = vmatprep.subr.mxu0 0.0
    %52 = vmatpush1.msra.mxu0 %v25
    %53 = vmatprep.subr.mxu0 0.0
    %54 = vmatpush1.msra.mxu0 %v26
    %55 = vmatprep.subr.mxu0 0.0
    %56 = vmatpush1.msra.mxu0 %v27
    %57 = vmatprep.subr.mxu0 0.0
    %58 = vmatpush1.msra.mxu0 %v28
    %59 = vmatprep.subr.mxu0 0.0
    %60 = vmatpush1.msra.mxu0 %v29
    %61 = vmatprep.subr.mxu0 0.0
    %62 = vmatpush1.msra.mxu0 %v30
    %63 = vmatprep.subr.mxu0 0.0
    %64 = vmatpush1.msra.mxu0 %v31
    %65 = vmatprep.subr.mxu0 0.0
    %66 = vmatpush1.msra.mxu0 %v32
    %67 = vmatprep.subr.mxu0 0.0
    %68 = vmatpush1.msra.mxu0 0.0
    %69 = vmatprep.subr.mxu0 0.0
    %70 = vmatpush1.msra.mxu0 0.0
    %71 = vmatprep.subr.mxu0 0.0
    %72 = vmatpush1.msra.mxu0 0.0
    %73 = vmatprep.subr.mxu0 0.0
    %74 = vmatpush1.msra.mxu0 0.0
    %75 = vmatprep.subr.mxu0 0.0
    %76 = vmatpush1.msra.mxu0 0.0
    %77 = vmatprep.subr.mxu0 0.0
    %78 = vmatpush1.msra.mxu0 0.0
    %79 = vmatprep.subr.mxu0 0.0
    %80 = vmatpush1.msra.mxu0 0.0
    %81 = vmatprep.subr.mxu0 0.0
    %82 = vmatpush1.msra.mxu0 0.0
    %83 = vmatprep.subr.mxu0 0.0
    %84 = vmatpush1.msra.mxu0 0.0
    %85 = vmatprep.subr.mxu0 0.0
    %86 = vmatpush1.msra.mxu0 0.0
    %87 = vmatprep.subr.mxu0 0.0
    %88 = vmatpush1.msra.mxu0 0.0
    %89 = vmatprep.subr.mxu0 0.0
    %90 = vmatpush1.msra.mxu0 0.0
    %91 = vmatprep.subr.mxu0 0.0
    %92 = vmatpush1.msra.mxu0 0.0
    %93 = vmatprep.subr.mxu0 0.0
    %94 = vmatpush1.msra.mxu0 0.0
    %95 = vmatprep.subr.mxu0 0.0
    %96 = vmatpush1.msra.mxu0 0.0
    %97 = vmatprep.subr.mxu0 0.0
    %98 = vmatpush1.msra.mxu0 0.0
    %99 = vmatprep.mubr.f32.mxu0 0.0
    %100 = vmatmul.mubr.f32.gmra.mrb[0].mxu0 %v16
    %v101 = vpop.f32.mrb[0].mxu0
    %v102 = vadd.f32 %v34, %v101
    %v103 = vpop.f32.mrb[0].mxu0
    %104 = vdwg.mxu0
    %vm105 = vcmask 25600
    %106 = vst.msk [vmem:[#allocation3] sm:$0x3] %vm105, %v102
    // Predicated region
    $region14: #{tpu_custom_call.1} parent=1 // pred_check
      _
    $region15: #{tpu_custom_call.1} parent=1 // pred_check_branch
      %108 = sbr.rel (0) target = $region17
    $region16: #{tpu_custom_call.1} parent=1 // pred_region
      %s110 = ssub.s32 32, 32
      %111 = vsyncadd [#allocation4], %s110
      %s113 = sshll.u32 [#allocation3], 4
      %s114 = int_to_ptr.vmem [resolvable:$true] %s113
      %116 = dma.vmem_to_hbm [thread:$0]  %s114, 32, %s3, [#allocation4]
    $region17: #{tpu_custom_call.1} parent=1 // pred_fallthru
      _
    // Predicated region
    $region18: #{tpu_custom_call.1} parent=1 // pred_check
      _
    $region19: #{tpu_custom_call.1} parent=1 // pred_check_branch
      %118 = sbr.rel (0) target = $region21
    $region20: #{tpu_custom_call.1} parent=1 // pred_region
      %119 = dma.done [#allocation4], 32
    $region21: #{tpu_custom_call.1} parent=1 // pred_fallthru
      _
    %120 = vsyncpa [#allocation4], 1

</llo_original>
